<compile_context>
chip_gen: v7x
topology: tpu7x:2x2x1
jax: 0.10.0
libtpu: 0.0.40
codegen_flags: <defaults>
</compile_context>

<pallas_src>
import functools
import math

import jax
import jax.numpy as jnp
from jax.experimental import pallas as pl
from jax.experimental.pallas import tpu as pltpu

# ----------------------------- module hyper-params -----------------------------
IN_FEATURES = 8
OUT_FEATURES = 16
GRID_SIZE = 2
SPLINE_ORDER = 2
GRID_RANGE = (-3.0, 3.0)
NCOEF = GRID_SIZE + SPLINE_ORDER                      # 4
NGRID = GRID_SIZE + 2 * SPLINE_ORDER + 1              # 7 knots per feature
K_FUSED = IN_FEATURES * (1 + NCOEF)                   # 40 (base + spline slab)

# uniform knot vector, identical for every feature (module __init__ buffer)
_H = (GRID_RANGE[1] - GRID_RANGE[0]) / GRID_SIZE
KNOTS = tuple(float(j) * _H + GRID_RANGE[0]
              for j in range(-SPLINE_ORDER, GRID_SIZE + SPLINE_ORDER + 1))

TILE_CAP = 8192          # ~1.5 MB VMEM/tile incl. double-buffered I/O; v5e-safe
MAX_CHUNK = 512          # lane-chunk for elementwise work (bounds live vregs)
ELEMWISE_OPS = 90        # approx VALU ops per element (for CostEstimate only)


def _gelu(x, approximate=False):
    if approximate:
        # tanh approximation -> EUP slot instead of the erf VPU polynomial.
        # NOTE: deviates from torch's exact GELU beyond ~1e-3; default OFF.
        return jax.nn.gelu(x, approximate=True)
    # torch.nn.GELU default: 0.5*x*(1+erf(x/sqrt(2)))
    return 0.5 * x * (1.0 + jax.lax.erf(x * 0.7071067811865476))


# ------------------------------- Pallas kernel ---------------------------------
def kan_kernel(x_ref, w_ref, o_ref, *, knots, chunk, approx_gelu):
    tile_b = x_ref.shape[1]
    n_chunks = tile_b // chunk
    t0 = knots[0]
    inv_h = 1.0 / (knots[1] - knots[0])                   # uniform grid spacing

    w = w_ref[...]                                        # (OUT, K_FUSED), hoisted

    @pl.loop(0, n_chunks)
    def _(c):
        start = pl.multiple_of(c * chunk, chunk)
        x = x_ref[:, pl.ds(start, chunk)]                 # (IN, chunk), lane-dense

        # --- base path activation ---
        base = _gelu(x, approx_gelu)

        # --- degree-0 bases as step-function differences (shared compares) ---
        steps = [(x >= knots[j]).astype(jnp.float32) for j in range(NGRID)]
        b = [steps[j] - steps[j + 1] for j in range(NGRID - 1)]

        # --- Cox-de Boor, factored around the uniform grid ---
        # knots[j] = t0 + j*h  =>  (x-knots[j])/(k*h) = (u-j)/k,
        #                          (knots[j+k+1]-x)/(k*h) = 1 - (u-(j+1))/k
        u = (x - t0) * inv_h
        d = [u] + [u - float(j) for j in range(1, NGRID - 1)]   # d_j = u - j
        for k in range(1, SPLINE_ORDER + 1):
            if k == 1:
                left = d
            else:
                inv_k = 1.0 / k
                left = [d[j] * inv_k for j in range(NGRID - k)]
            b = [left[j] * b[j] + (1.0 - left[j + 1]) * b[j + 1]
                 for j in range(NGRID - 1 - k)]
            # ends with NCOEF arrays of shape (IN, chunk)

        # --- fused MXU matmul for this chunk: (OUT,40) @ (40,chunk) ---
        act = jnp.concatenate([base] + b, axis=0)              # (K_FUSED, chunk)
        o_ref[:, pl.ds(start, chunk)] = jnp.dot(
            w, act, preferred_element_type=jnp.float32).astype(o_ref.dtype)


# ------------------------------- wrapper / glue ---------------------------------
def _round_up(n, m):
    return ((n + m - 1) // m) * m


def _pick_tile_b(batch):
    """Auto tile: big enough to amortize per-grid-step overhead, but >=2 grid
    steps when the batch allows (v7x megacore), capped at TILE_CAP (v5e VMEM)."""
    b128 = max(128, _round_up(batch, 128))
    if b128 <= 256:
        return b128
    half = _round_up((b128 + 1) // 2, 128)
    return int(min(TILE_CAP, half))


def _pick_chunk(tile_b):
    for c in (MAX_CHUNK, 256, 128):
        if tile_b % c == 0:
            return c
    return 128


@functools.partial(jax.jit, static_argnames=("tile_b", "approx_gelu"))
def kan_layer_forward(x, base_weight, shap_weight, *, tile_b=None, approx_gelu=False):
    """x: (..., in_features) -> (..., out_features)."""
    orig_shape = x.shape
    xf = x.reshape(-1, IN_FEATURES).astype(jnp.float32)
    B = xf.shape[0]
    if tile_b is None:
        tile_b = _pick_tile_b(B)
    assert tile_b % 128 == 0, "tile_b must be a multiple of 128 (lane width)"
    chunk = _pick_chunk(tile_b)
    B_pad = _round_up(B, tile_b)

    # single fused pad+transpose pass -> feature-major (IN, B_pad) for the kernel
    xt = jnp.pad(xf, ((0, B_pad - B), (0, 0))).T                      # (IN, B_pad)

    # fused weight slab: [base_weight | per-coefficient shap slices] -> (OUT, 40)
    # spline_output[b,o] = sum_{f,c} bases[b,f,c] * shap_weight[o, f*NCOEF + c]
    sw = shap_weight.reshape(OUT_FEATURES, IN_FEATURES, NCOEF).astype(jnp.float32)
    w_full = jnp.concatenate(
        [base_weight.astype(jnp.float32)] + [sw[:, :, c] for c in range(NCOEF)],
        axis=1)                                                       # (OUT, K_FUSED)

    kernel = functools.partial(kan_kernel, knots=KNOTS, chunk=chunk,
                               approx_gelu=approx_gelu)
    cost = pl.CostEstimate(
        flops=int((2 * OUT_FEATURES * K_FUSED + ELEMWISE_OPS * IN_FEATURES) * B_pad),
        transcendentals=int(IN_FEATURES * B_pad),
        bytes_accessed=int(4 * (IN_FEATURES + OUT_FEATURES) * B_pad
                           + 4 * OUT_FEATURES * K_FUSED),
    )
    out_t = pl.pallas_call(
        kernel,
        out_shape=jax.ShapeDtypeStruct((OUT_FEATURES, B_pad), jnp.float32),
        grid_spec=pltpu.PrefetchScalarGridSpec(
            num_scalar_prefetch=0,
            grid=(B_pad // tile_b,),
            in_specs=[
                pl.BlockSpec((IN_FEATURES, tile_b), lambda i: (0, i)),
                pl.BlockSpec((OUT_FEATURES, K_FUSED), lambda i: (0, 0)),
            ],
            out_specs=pl.BlockSpec((OUT_FEATURES, tile_b), lambda i: (0, i)),
        ),
        compiler_params=pltpu.CompilerParams(dimension_semantics=("parallel",)),
        cost_estimate=cost,
    )(xt, w_full)

    # single fused slice+transpose pass back to batch-major
    out = out_t[:, :B].T                                              # (B, OUT)
    return out.reshape(*orig_shape[:-1], OUT_FEATURES)


# --------------------------- plain-JAX helpers (glue) ---------------------------
def b_splines_jax(x, grid):
    """x: (B, IN) -> (B, IN, NCOEF); mirrors KAN_layer.b_splines."""
    xe = x[:, :, None]
    g = grid[None, :, :]
    bases = ((xe >= g[:, :, :-1]) & (xe < g[:, :, 1:])).astype(x.dtype)
    for k in range(1, SPLINE_ORDER + 1):
        bases = ((xe - g[:, :, :-(k + 1)]) / (g[:, :, k:-1] - g[:, :, :-(k + 1)]) * bases[:, :, :-1]
                 + (g[:, :, k + 1:] - xe) / (g[:, :, k + 1:] - g[:, :, 1:-k]) * bases[:, :, 1:])
    return bases


def deep_shap_linear_weight(net_w, bflat):
    """Analytic DeepSHAP for a single nn.Linear.

    Mirrors: explainer = DeepExplainer(net, bflat[:10]);
             shap_values(bflat[:10]).mean(0).swapaxes(1, 0)
    phi[i, f, o] = W[o, f] * (x[i, f] - mean_bg[f]).
    """
    expl = bflat[:10]
    bg_mean = expl.mean(axis=0)                         # background == explained samples
    phi = (expl - bg_mean)[:, :, None] * net_w.T[None, :, :]   # (n, F, O)
    return jnp.mean(phi, axis=0).swapaxes(1, 0)                 # (O, F)


def kan_ref(x, grid, base_weight, shap_weight):
    xf = x.reshape(-1, IN_FEATURES)
    base_out = _gelu(xf) @ base_weight.T
    bflat = b_splines_jax(xf, grid).reshape(xf.shape[0], -1)
    spline_out = bflat @ shap_weight.T
    return (base_out + spline_out).reshape(*x.shape[:-1], OUT_FEATURES)


# ------------------------------------ main --------------------------------------
if __name__ == "__main__":
    key = jax.random.PRNGKey(0)
    k_x, k_x2, k_bw, k_nw = jax.random.split(key, 4)

    # grid buffer (for the reference / SHAP glue): same uniform knots per feature
    grid = jnp.broadcast_to(jnp.asarray(KNOTS, dtype=jnp.float32),
                            (IN_FEATURES, NGRID))                     # (8, 7)

    # base_weight ~ kaiming_uniform(a=sqrt(5)) on (out, in) -> U(-1/sqrt(in), 1/sqrt(in))
    bound_b = 1.0 / math.sqrt(IN_FEATURES)
    base_weight = jax.random.uniform(k_bw, (OUT_FEATURES, IN_FEATURES),
                                     minval=-bound_b, maxval=bound_b, dtype=jnp.float32)

    # self.net = nn.Linear(in*(gs+so), out): default uniform(-1/sqrt(fan_in), ...)
    fan_in_net = IN_FEATURES * NCOEF
    bound_n = 1.0 / math.sqrt(fan_in_net)
    net_weight = jax.random.uniform(k_nw, (OUT_FEATURES, fan_in_net),
                                    minval=-bound_n, maxval=bound_n, dtype=jnp.float32)

    # --- test 1: small deterministic input (batch=2, seq=16, in=8) -> 32 rows ---
    x = jax.random.normal(k_x, (2, 16, IN_FEATURES), dtype=jnp.float32) * 2.0
    xf = x.reshape(-1, IN_FEATURES)
    bflat = b_splines_jax(xf, grid).reshape(xf.shape[0], -1)
    shap_w = deep_shap_linear_weight(net_weight, bflat)               # (OUT, IN*NCOEF)

    out = jax.block_until_ready(kan_layer_forward(x, base_weight, shap_w))
    ref = kan_ref(x, grid, base_weight, shap_w)
    assert out.shape == (2, 16, OUT_FEATURES), out.shape
    assert jnp.allclose(out, ref, atol=1e-5, rtol=1e-5), float(jnp.max(jnp.abs(out - ref)))

    # --- test 2: non-aligned batch exercising multi-step grid + multi-chunk loop ---
    x2 = jax.random.normal(k_x2, (2, 300, IN_FEATURES), dtype=jnp.float32) * 2.0
    xf2 = x2.reshape(-1, IN_FEATURES)
    bflat2 = b_splines_jax(xf2, grid).reshape(xf2.shape[0], -1)
    shap_w2 = deep_shap_linear_weight(net_weight, bflat2)

    out2 = jax.block_until_ready(kan_layer_forward(x2, base_weight, shap_w2))
    ref2 = kan_ref(x2, grid, base_weight, shap_w2)
    assert out2.shape == (2, 300, OUT_FEATURES), out2.shape
    assert jnp.allclose(out2, ref2, atol=1e-5, rtol=1e-5), float(jnp.max(jnp.abs(out2 - ref2)))

    print("KERNEL_OK")
</pallas_src>

<mosaic_0001>
module attributes {stable_mosaic.version = 11 : i64} {
  func.func @kan_kernel(%arg0: i32, %arg1: memref<8x128xf32, #tpu.memory_space<vmem>>, %arg2: memref<16x40xf32, #tpu.memory_space<vmem>>, %arg3: memref<16x128xf32, #tpu.memory_space<vmem>>) attributes {dimension_semantics = [#tpu.dimension_semantics<parallel>], iteration_bounds = array<i64: 1>, scalar_prefetch = 0 : i64, scratch_operands = 0 : i64, tpu.core_type = #tpu.core_type<tc>, window_params = [{transform_indices = @transform_0, window_bounds = array<i64: 8, 128>}, {pipeline_mode = #tpu.pipeline_mode<synchronous>, transform_indices = @transform_1, window_bounds = array<i64: 16, 40>}, {transform_indices = @transform_2, window_bounds = array<i64: 16, 128>}]} {
    %c0 = arith.constant 0 : index
    %c0_0 = arith.constant 0 : index
    %0 = vector.load %arg2[%c0, %c0_0] : memref<16x40xf32, #tpu.memory_space<vmem>>, vector<16x40xf32>
    %c0_i32 = arith.constant 0 : i32
    %c1_i32 = arith.constant 1 : i32
    %1 = arith.muli %c0_i32, %c1_i32 : i32
    %c0_i32_1 = arith.constant 0 : i32
    %2 = arith.addi %c0_i32_1, %1 : i32
    %c128_i32 = arith.constant 128 : i32
    %3 = arith.muli %2, %c128_i32 : i32
    %4 = tpu.assume_multiple %3, 128 : i32
    %c0_2 = arith.constant 0 : index
    %5 = arith.index_cast %4 : i32 to index
    %6 = vector.load %arg1[%c0_2, %5] : memref<8x128xf32, #tpu.memory_space<vmem>>, vector<8x128xf32>
    %cst = arith.constant 5.000000e-01 : f32
    %7 = vector.broadcast %cst : f32 to vector<8x128xf32>
    %8 = arith.mulf %7, %6 : vector<8x128xf32>
    %cst_3 = arith.constant 0.707106769 : f32
    %9 = vector.broadcast %cst_3 : f32 to vector<8x128xf32>
    %10 = arith.mulf %6, %9 : vector<8x128xf32>
    %11 = math.erf %10 : vector<8x128xf32>
    %cst_4 = arith.constant 1.000000e+00 : f32
    %12 = vector.broadcast %cst_4 : f32 to vector<8x128xf32>
    %13 = arith.addf %12, %11 : vector<8x128xf32>
    %14 = arith.mulf %8, %13 : vector<8x128xf32>
    %cst_5 = arith.constant -9.000000e+00 : f32
    %15 = vector.broadcast %cst_5 : f32 to vector<8x128xf32>
    %16 = arith.cmpf oge, %6, %15 : vector<8x128xf32>
    %17 = arith.extui %16 : vector<8x128xi1> to vector<8x128xi32>
    %18 = arith.sitofp %17 : vector<8x128xi32> to vector<8x128xf32>
    %cst_6 = arith.constant -6.000000e+00 : f32
    %19 = vector.broadcast %cst_6 : f32 to vector<8x128xf32>
    %20 = arith.cmpf oge, %6, %19 : vector<8x128xf32>
    %21 = arith.extui %20 : vector<8x128xi1> to vector<8x128xi32>
    %22 = arith.sitofp %21 : vector<8x128xi32> to vector<8x128xf32>
    %cst_7 = arith.constant -3.000000e+00 : f32
    %23 = vector.broadcast %cst_7 : f32 to vector<8x128xf32>
    %24 = arith.cmpf oge, %6, %23 : vector<8x128xf32>
    %25 = arith.extui %24 : vector<8x128xi1> to vector<8x128xi32>
    %26 = arith.sitofp %25 : vector<8x128xi32> to vector<8x128xf32>
    %cst_8 = arith.constant 0.000000e+00 : f32
    %27 = vector.broadcast %cst_8 : f32 to vector<8x128xf32>
    %28 = arith.cmpf oge, %6, %27 : vector<8x128xf32>
    %29 = arith.extui %28 : vector<8x128xi1> to vector<8x128xi32>
    %30 = arith.sitofp %29 : vector<8x128xi32> to vector<8x128xf32>
    %cst_9 = arith.constant 3.000000e+00 : f32
    %31 = vector.broadcast %cst_9 : f32 to vector<8x128xf32>
    %32 = arith.cmpf oge, %6, %31 : vector<8x128xf32>
    %33 = arith.extui %32 : vector<8x128xi1> to vector<8x128xi32>
    %34 = arith.sitofp %33 : vector<8x128xi32> to vector<8x128xf32>
    %cst_10 = arith.constant 6.000000e+00 : f32
    %35 = vector.broadcast %cst_10 : f32 to vector<8x128xf32>
    %36 = arith.cmpf oge, %6, %35 : vector<8x128xf32>
    %37 = arith.extui %36 : vector<8x128xi1> to vector<8x128xi32>
    %38 = arith.sitofp %37 : vector<8x128xi32> to vector<8x128xf32>
    %cst_11 = arith.constant 9.000000e+00 : f32
    %39 = vector.broadcast %cst_11 : f32 to vector<8x128xf32>
    %40 = arith.cmpf oge, %6, %39 : vector<8x128xf32>
    %41 = arith.extui %40 : vector<8x128xi1> to vector<8x128xi32>
    %42 = arith.sitofp %41 : vector<8x128xi32> to vector<8x128xf32>
    %43 = arith.subf %18, %22 : vector<8x128xf32>
    %44 = arith.subf %22, %26 : vector<8x128xf32>
    %45 = arith.subf %26, %30 : vector<8x128xf32>
    %46 = arith.subf %30, %34 : vector<8x128xf32>
    %47 = arith.subf %34, %38 : vector<8x128xf32>
    %48 = arith.subf %38, %42 : vector<8x128xf32>
    %cst_12 = arith.constant -9.000000e+00 : f32
    %49 = vector.broadcast %cst_12 : f32 to vector<8x128xf32>
    %50 = arith.subf %6, %49 : vector<8x128xf32>
    %cst_13 = arith.constant 0.333333343 : f32
    %51 = vector.broadcast %cst_13 : f32 to vector<8x128xf32>
    %52 = arith.mulf %50, %51 : vector<8x128xf32>
    %cst_14 = arith.constant 1.000000e+00 : f32
    %53 = vector.broadcast %cst_14 : f32 to vector<8x128xf32>
    %54 = arith.subf %52, %53 : vector<8x128xf32>
    %cst_15 = arith.constant 2.000000e+00 : f32
    %55 = vector.broadcast %cst_15 : f32 to vector<8x128xf32>
    %56 = arith.subf %52, %55 : vector<8x128xf32>
    %cst_16 = arith.constant 3.000000e+00 : f32
    %57 = vector.broadcast %cst_16 : f32 to vector<8x128xf32>
    %58 = arith.subf %52, %57 : vector<8x128xf32>
    %cst_17 = arith.constant 4.000000e+00 : f32
    %59 = vector.broadcast %cst_17 : f32 to vector<8x128xf32>
    %60 = arith.subf %52, %59 : vector<8x128xf32>
    %cst_18 = arith.constant 5.000000e+00 : f32
    %61 = vector.broadcast %cst_18 : f32 to vector<8x128xf32>
    %62 = arith.subf %52, %61 : vector<8x128xf32>
    %63 = arith.mulf %52, %43 : vector<8x128xf32>
    %cst_19 = arith.constant 1.000000e+00 : f32
    %64 = vector.broadcast %cst_19 : f32 to vector<8x128xf32>
    %65 = arith.subf %64, %54 : vector<8x128xf32>
    %66 = arith.mulf %65, %44 : vector<8x128xf32>
    %67 = arith.addf %63, %66 : vector<8x128xf32>
    %68 = arith.mulf %54, %44 : vector<8x128xf32>
    %cst_20 = arith.constant 1.000000e+00 : f32
    %69 = vector.broadcast %cst_20 : f32 to vector<8x128xf32>
    %70 = arith.subf %69, %56 : vector<8x128xf32>
    %71 = arith.mulf %70, %45 : vector<8x128xf32>
    %72 = arith.addf %68, %71 : vector<8x128xf32>
    %73 = arith.mulf %56, %45 : vector<8x128xf32>
    %cst_21 = arith.constant 1.000000e+00 : f32
    %74 = vector.broadcast %cst_21 : f32 to vector<8x128xf32>
    %75 = arith.subf %74, %58 : vector<8x128xf32>
    %76 = arith.mulf %75, %46 : vector<8x128xf32>
    %77 = arith.addf %73, %76 : vector<8x128xf32>
    %78 = arith.mulf %58, %46 : vector<8x128xf32>
    %cst_22 = arith.constant 1.000000e+00 : f32
    %79 = vector.broadcast %cst_22 : f32 to vector<8x128xf32>
    %80 = arith.subf %79, %60 : vector<8x128xf32>
    %81 = arith.mulf %80, %47 : vector<8x128xf32>
    %82 = arith.addf %78, %81 : vector<8x128xf32>
    %83 = arith.mulf %60, %47 : vector<8x128xf32>
    %cst_23 = arith.constant 1.000000e+00 : f32
    %84 = vector.broadcast %cst_23 : f32 to vector<8x128xf32>
    %85 = arith.subf %84, %62 : vector<8x128xf32>
    %86 = arith.mulf %85, %48 : vector<8x128xf32>
    %87 = arith.addf %83, %86 : vector<8x128xf32>
    %cst_24 = arith.constant 5.000000e-01 : f32
    %88 = vector.broadcast %cst_24 : f32 to vector<8x128xf32>
    %89 = arith.mulf %52, %88 : vector<8x128xf32>
    %cst_25 = arith.constant 5.000000e-01 : f32
    %90 = vector.broadcast %cst_25 : f32 to vector<8x128xf32>
    %91 = arith.mulf %54, %90 : vector<8x128xf32>
    %cst_26 = arith.constant 5.000000e-01 : f32
    %92 = vector.broadcast %cst_26 : f32 to vector<8x128xf32>
    %93 = arith.mulf %56, %92 : vector<8x128xf32>
    %cst_27 = arith.constant 5.000000e-01 : f32
    %94 = vector.broadcast %cst_27 : f32 to vector<8x128xf32>
    %95 = arith.mulf %58, %94 : vector<8x128xf32>
    %cst_28 = arith.constant 5.000000e-01 : f32
    %96 = vector.broadcast %cst_28 : f32 to vector<8x128xf32>
    %97 = arith.mulf %60, %96 : vector<8x128xf32>
    %98 = arith.mulf %89, %67 : vector<8x128xf32>
    %cst_29 = arith.constant 1.000000e+00 : f32
    %99 = vector.broadcast %cst_29 : f32 to vector<8x128xf32>
    %100 = arith.subf %99, %91 : vector<8x128xf32>
    %101 = arith.mulf %100, %72 : vector<8x128xf32>
    %102 = arith.addf %98, %101 : vector<8x128xf32>
    %103 = arith.mulf %91, %72 : vector<8x128xf32>
    %cst_30 = arith.constant 1.000000e+00 : f32
    %104 = vector.broadcast %cst_30 : f32 to vector<8x128xf32>
    %105 = arith.subf %104, %93 : vector<8x128xf32>
    %106 = arith.mulf %105, %77 : vector<8x128xf32>
    %107 = arith.addf %103, %106 : vector<8x128xf32>
    %108 = arith.mulf %93, %77 : vector<8x128xf32>
    %cst_31 = arith.constant 1.000000e+00 : f32
    %109 = vector.broadcast %cst_31 : f32 to vector<8x128xf32>
    %110 = arith.subf %109, %95 : vector<8x128xf32>
    %111 = arith.mulf %110, %82 : vector<8x128xf32>
    %112 = arith.addf %108, %111 : vector<8x128xf32>
    %113 = arith.mulf %95, %82 : vector<8x128xf32>
    %cst_32 = arith.constant 1.000000e+00 : f32
    %114 = vector.broadcast %cst_32 : f32 to vector<8x128xf32>
    %115 = arith.subf %114, %97 : vector<8x128xf32>
    %116 = arith.mulf %115, %87 : vector<8x128xf32>
    %117 = arith.addf %113, %116 : vector<8x128xf32>
    %118 = tpu.concatenate %14, %102, %107, %112, %117 in 0 : vector<8x128xf32>, vector<8x128xf32>, vector<8x128xf32>, vector<8x128xf32>, vector<8x128xf32> -> vector<40x128xf32>
    %cst_33 = arith.constant dense<0.000000e+00> : vector<16x128xf32>
    %119 = tpu.matmul %0, %118, %cst_33 {dimension_numbers = #tpu.dot_dimension_numbers<[1], [0], [0], [1], [0, 0, 1, 1], [], []>} : vector<16x40xf32>, vector<40x128xf32>, vector<16x128xf32> -> vector<16x128xf32>
    %c0_34 = arith.constant 0 : index
    %120 = arith.index_cast %4 : i32 to index
    %121 = vector.load %arg3[%c0_34, %120] : memref<16x128xf32, #tpu.memory_space<vmem>>, vector<16x128xf32>
    tpu.vector_store %arg3[%c0_34, %120], %119 {strides = array<i32>} : memref<16x128xf32, #tpu.memory_space<vmem>>, vector<16x128xf32>,
    %c1_i32_35 = arith.constant 1 : i32
    return
  }
  func.func @transform_0(%arg0: i32) -> (i32, i32) {
    %c0_i32 = arith.constant 0 : i32
    %c0_i32_0 = arith.constant 0 : i32
    return %c0_i32, %arg0 : i32, i32
  }
  func.func @transform_1(%arg0: i32) -> (i32, i32) {
    %c0_i32 = arith.constant 0 : i32
    %c0_i32_0 = arith.constant 0 : i32
    %c0_i32_1 = arith.constant 0 : i32
    return %c0_i32, %c0_i32_0 : i32, i32
  }
  func.func @transform_2(%arg0: i32) -> (i32, i32) {
    %c0_i32 = arith.constant 0 : i32
    %c0_i32_0 = arith.constant 0 : i32
    return %c0_i32, %arg0 : i32, i32
  }
}

</mosaic_0001>

<llo_original>
// kernel: kan_layer_forward.1
$region0: #{kan_layer_forward.1}
  #allocation0 [shape = 'u32[]', space=smem, size = 0x4, offset = 0x4, fixed_abs, tag = 'smem constant byte address 0x4 - core index']
  #allocation1 [shape = 'u32[144,128]{1,0:T(1,128)}', space=vmem, size = 0x12000, scoped, tag = 'internal scratch']
  %s0 = inlined_call_operand.vmem [shape: f32[8,128], index: 0, kind: input, shape index: {}]
  %s1 = inlined_call_operand.vmem [shape: f32[16,40], index: 1, kind: input, shape index: {}]
  %s2 = inlined_call_operand.vmem [shape: f32[16,128], index: 2, kind: output, shape index: {}]
  %s3 = sld [smem:[#allocation0]]
  $region18: #{kan_layer_forward.1} parent=0
    _
  %s5 = ssub.s32 1, %s3
  %s6 = scalar_select 0, %s5, %s3
  // Predicated region
  $region2: #{kan_layer_forward.1} parent=0 // pred_check
    _
  $region3: #{kan_layer_forward.1} parent=0 // pred_check_branch
    %8 = sbr.rel (0) target = $region5
  $region4: #{kan_layer_forward.1} parent=0 // pred_region
    _
  $region5: #{kan_layer_forward.1} parent=0 // pred_fallthru
    _
  // Predicated region
  $region6: #{kan_layer_forward.1} parent=0 // pred_check
    _
  $region7: #{kan_layer_forward.1} parent=0 // pred_check_branch
    %10 = sbr.rel (0) target = $region9
  $region8: #{kan_layer_forward.1} parent=0 // pred_region
    _
  $region9: #{kan_layer_forward.1} parent=0 // pred_fallthru
    _
  %v11 = vld [vmem:[%s1] sm:$0xff]
  %v12 = vld [vmem:[%s1 + $0x8] sm:$0xff]
  %v13 = vld [vmem:[%s0] sm:$0xff]
  %v14 = vmul.f32 %v13, 0.5
  %v15 = vmul.f32 %v13, 0.70710677
  %v16 = verf.f32.pop %v15
  %v17 = vadd.f32 %v16, 1.0
  %v18 = vmul.f32 %v14, %v17
  %vm19 = vcmp.ge.f32.partialorder %v13, -9.0
  %v20 = vsel %vm19, 1, 0
  %v21 = vcvt.s32.f32 %v20
  %vm22 = vcmp.ge.f32.partialorder %v13, -6.0
  %v23 = vsel %vm22, 1, 0
  %v24 = vcvt.s32.f32 %v23
  %vm25 = vcmp.ge.f32.partialorder %v13, -3.0
  %v26 = vsel %vm25, 1, 0
  %v27 = vcvt.s32.f32 %v26
  %vm28 = vcmp.ge.f32.partialorder %v13, 0.0
  %v29 = vsel %vm28, 1, 0
  %v30 = vcvt.s32.f32 %v29
  %vm31 = vcmp.ge.f32.partialorder %v13, 3.0
  %v32 = vsel %vm31, 1, 0
  %v33 = vcvt.s32.f32 %v32
  %vm34 = vcmp.ge.f32.partialorder %v13, 6.0
  %v35 = vsel %vm34, 1, 0
  %v36 = vcvt.s32.f32 %v35
  %vm37 = vcmp.ge.f32.partialorder %v13, 9.0
  %v38 = vsel %vm37, 1, 0
  %v39 = vcvt.s32.f32 %v38
  %v40 = vsub.f32 %v21, %v24
  %v41 = vsub.f32 %v24, %v27
  %v42 = vsub.f32 %v27, %v30
  %v43 = vsub.f32 %v30, %v33
  %v44 = vsub.f32 %v33, %v36
  %v45 = vsub.f32 %v36, %v39
  %v46 = vsub.f32 %v13, -9.0
  %v47 = vmul.f32 %v46, 0.33333334
  %v48 = vsub.f32 %v47, 1.0
  %v49 = vsub.f32 %v47, 2.0
  %v50 = vsub.f32 %v47, 3.0
  %v51 = vsub.f32 %v47, 4.0
  %v52 = vsub.f32 %v47, 5.0
  %v53 = vmul.f32 %v47, %v40
  %v54 = vsub.f32 1.0, %v48
  %v55 = vmul.f32 %v54, %v41
  %v56 = vadd.f32 %v53, %v55
  %v57 = vmul.f32 %v48, %v41
  %v58 = vsub.f32 1.0, %v49
  %v59 = vmul.f32 %v58, %v42
  %v60 = vadd.f32 %v57, %v59
  %v61 = vmul.f32 %v49, %v42
  %v62 = vsub.f32 1.0, %v50
  %v63 = vmul.f32 %v62, %v43
  %v64 = vadd.f32 %v61, %v63
  %v65 = vmul.f32 %v50, %v43
  %v66 = vsub.f32 1.0, %v51
  %v67 = vmul.f32 %v66, %v44
  %v68 = vadd.f32 %v65, %v67
  %v69 = vmul.f32 %v51, %v44
  %v70 = vsub.f32 1.0, %v52
  %v71 = vmul.f32 %v70, %v45
  %v72 = vadd.f32 %v69, %v71
  %v73 = vmul.f32 %v47, 0.5
  %v74 = vmul.f32 %v48, 0.5
  %v75 = vmul.f32 %v49, 0.5
  %v76 = vmul.f32 %v50, 0.5
  %v77 = vmul.f32 %v51, 0.5
  %v78 = vmul.f32 %v73, %v56
  %v79 = vsub.f32 1.0, %v74
  %v80 = vmul.f32 %v79, %v60
  %v81 = vadd.f32 %v78, %v80
  %v82 = vmul.f32 %v74, %v60
  %v83 = vsub.f32 1.0, %v75
  %v84 = vmul.f32 %v83, %v64
  %v85 = vadd.f32 %v82, %v84
  %v86 = vmul.f32 %v75, %v64
  %v87 = vsub.f32 1.0, %v76
  %v88 = vmul.f32 %v87, %v68
  %v89 = vadd.f32 %v86, %v88
  %v90 = vmul.f32 %v76, %v68
  %v91 = vsub.f32 1.0, %v77
  %v92 = vmul.f32 %v91, %v72
  %v93 = vadd.f32 %v90, %v92
  %vm94 = vcmask 326656
  %v96 = vsel %vm94, %v11, 0
  %v99 = vsel %vm94, %v12, 0
  %101 = vmatprep.subr.mxu0 0.0
  %102 = vmatpush1.msra.mxu0 %v18
  %103 = vmatprep.subr.mxu0 0.0
  %104 = vmatpush1.msra.mxu0 %v81
  %105 = vmatprep.subr.mxu0 0.0
  %106 = vmatpush1.msra.mxu0 %v85
  %107 = vmatprep.subr.mxu0 0.0
  %108 = vmatpush1.msra.mxu0 %v89
  %109 = vmatprep.subr.mxu0 0.0
  %110 = vmatpush1.msra.mxu0 %v93
  %111 = vmatprep.subr.mxu0 0.0
  %112 = vmatpush1.msra.mxu0 0.0
  %113 = vmatprep.subr.mxu0 0.0
  %114 = vmatpush1.msra.mxu0 0.0
  %115 = vmatprep.subr.mxu0 0.0
  %116 = vmatpush1.msra.mxu0 0.0
  %117 = vmatprep.subr.mxu0 0.0
  %118 = vmatpush1.msra.mxu0 0.0
  %119 = vmatprep.subr.mxu0 0.0
  %120 = vmatpush1.msra.mxu0 0.0
  %121 = vmatprep.subr.mxu0 0.0
  %122 = vmatpush1.msra.mxu0 0.0
  %123 = vmatprep.subr.mxu0 0.0
  %124 = vmatpush1.msra.mxu0 0.0
  %125 = vmatprep.subr.mxu0 0.0
  %126 = vmatpush1.msra.mxu0 0.0
  %127 = vmatprep.subr.mxu0 0.0
  %128 = vmatpush1.msra.mxu0 0.0
  %129 = vmatprep.subr.mxu0 0.0
  %130 = vmatpush1.msra.mxu0 0.0
  %131 = vmatprep.subr.mxu0 0.0
  %132 = vmatpush1.msra.mxu0 0.0
  %133 = vmatprep.subr.mxu0 0.0
  %134 = vmatpush1.msra.mxu0 0.0
  %135 = vmatprep.subr.mxu0 0.0
  %136 = vmatpush1.msra.mxu0 0.0
  %137 = vmatprep.subr.mxu0 0.0
  %138 = vmatpush1.msra.mxu0 0.0
  %139 = vmatprep.subr.mxu0 0.0
  %140 = vmatpush1.msra.mxu0 0.0
  %141 = vmatprep.subr.mxu0 0.0
  %142 = vmatpush1.msra.mxu0 0.0
  %143 = vmatprep.subr.mxu0 0.0
  %144 = vmatpush1.msra.mxu0 0.0
  %145 = vmatprep.subr.mxu0 0.0
  %146 = vmatpush1.msra.mxu0 0.0
  %147 = vmatprep.subr.mxu0 0.0
  %148 = vmatpush1.msra.mxu0 0.0
  %149 = vmatprep.subr.mxu0 0.0
  %150 = vmatpush1.msra.mxu0 0.0
  %151 = vmatprep.subr.mxu0 0.0
  %152 = vmatpush1.msra.mxu0 0.0
  %153 = vmatprep.subr.mxu0 0.0
  %154 = vmatpush1.msra.mxu0 0.0
  %155 = vmatprep.subr.mxu0 0.0
  %156 = vmatpush1.msra.mxu0 0.0
  %157 = vmatprep.subr.mxu0 0.0
  %158 = vmatpush1.msra.mxu0 0.0
  %159 = vmatprep.subr.mxu0 0.0
  %160 = vmatpush1.msra.mxu0 0.0
  %161 = vmatprep.subr.mxu0 0.0
  %162 = vmatpush1.msra.mxu0 0.0
  %163 = vmatprep.subr.mxu0 0.0
  %164 = vmatpush1.msra.mxu0 0.0
  %165 = vmatprep.mubr.f32.mxu0 0.0
  %166 = vmatmul.mubr.f32.gmra.mrb[0].mxu0 %v96
  %v167 = vpop.f32.mrb[0].mxu0
  %v168 = vadd.f32 0.0, %v167
  %v169 = vpop.f32.mrb[0].mxu0
  %170 = vmatprep.mubr.f32.mxu0 0.0
  %171 = vmatmul.mubr.f32.gmra.mrb[0].mxu0 %v99
  %v172 = vpop.f32.mrb[0].mxu0
  %v173 = vadd.f32 0.0, %v172
  %v174 = vpop.f32.mrb[0].mxu0
  %175 = vdwg.mxu0
  %176 = vst [vmem:[%s2] sm:$0xff] %v168
  %177 = vst [vmem:[%s2 + $0x8] sm:$0xff] %v173
  // Predicated region
  $region10: #{kan_layer_forward.1} parent=0 // pred_check
    _
  $region11: #{kan_layer_forward.1} parent=0 // pred_check_branch
    %179 = sbr.rel (0) target = $region13
  $region12: #{kan_layer_forward.1} parent=0 // pred_region
    _
  $region13: #{kan_layer_forward.1} parent=0 // pred_fallthru
    _
  // Predicated region
  $region14: #{kan_layer_forward.1} parent=0 // pred_check
    _
  $region15: #{kan_layer_forward.1} parent=0 // pred_check_branch
    %181 = sbr.rel (0) target = $region17
  $region16: #{kan_layer_forward.1} parent=0 // pred_region
    _
  $region17: #{kan_layer_forward.1} parent=0 // pred_fallthru
    _

</llo_original>
